<compile_context>
chip_gen: v7x
topology: tpu7x:2x2x1
jax: 0.10.0
libtpu: 0.0.40
codegen_flags: <defaults>
</compile_context>

<pallas_src>
import jax
import jax.numpy as jnp
from jax import lax
from jax.experimental import pallas as pl
from jax.experimental.pallas import tpu as pltpu


def _se_kernel(x1_ref, x2_ref, w1_ref, w2_ref, out_ref):
    # x1_ref / x2_ref / out_ref: (Nb, C, HW);  w1_ref: (Cr, C);  w2_ref: (C, Cr)
    _, _, HW = x1_ref.shape
    inv_hw = jnp.float32(1.0 / HW)

    # ---- squeeze: global average pool over the spatial (lane) axis ----------
    y = jnp.sum(x1_ref[...].astype(jnp.float32), axis=2) * inv_hw      # (Nb, C)

    # ---- excitation: Linear -> ReLU -> Linear -> Sigmoid (batched over Nb) ---
    # Contract on the feature axis of the PyTorch-layout weights (no transposes).
    h = lax.dot_general(y, w1_ref[...], (((1,), (1,)), ((), ())),
                        preferred_element_type=jnp.float32)            # (Nb, Cr)
    h = jnp.maximum(h, 0.0)
    g = lax.dot_general(h, w2_ref[...], (((1,), (1,)), ((), ())),
                        preferred_element_type=jnp.float32)            # (Nb, C)
    g = 1.0 / (1.0 + jnp.exp(-g))                                      # sigmoid

    # ---- scale + residual: x2 + x1 * g (per-channel broadcast over HW) -------
    # Re-read x1 from VMEM (cheap) instead of holding the whole tile live.
    out_ref[...] = (x2_ref[...] + x1_ref[...] * g[:, :, None]).astype(out_ref.dtype)


def _pick_block_batch(n, per_image_bytes, target_tile_bytes=2 << 20):
    """Largest divisor of n with tile <= ~target bytes; keep >=2 grid steps."""
    nb_cap = max(1, target_tile_bytes // max(per_image_bytes, 1))
    best = 1
    for d in range(1, n + 1):
        if n % d == 0 and d <= nb_cap:
            best = d
    # Keep at least 2 grid steps when possible (megacore sharding on v7x).
    if n // best < 2 and n >= 2:
        for d in range(best, 0, -1):
            if n % d == 0 and n // d >= 2:
                best = d
                break
    return best


def se_forward(x1_nchw, x2_nchw, w1, w2):
    """SE block forward.

    x1_nchw, x2_nchw : (N, C, H, W) float32
    w1 : (C // r, C)  -- weight of fc[0] (nn.Linear(C, C//r, bias=False))
    w2 : (C, C // r)  -- weight of fc[2] (nn.Linear(C//r, C, bias=False))
    returns (N, C, H, W) float32
    """
    N, C, H, W = x1_nchw.shape
    Cr = w1.shape[0]
    HW = H * W
    itemsize = jnp.dtype(x1_nchw.dtype).itemsize

    x1 = x1_nchw.reshape(N, C, HW)            # free reshape: lane dim = H*W
    x2 = x2_nchw.reshape(N, C, HW)

    # Block-batch selection: ~2 MiB tiles, Nb | N, grid >= 2 steps when N >= 2.
    per_image_bytes = C * HW * itemsize
    nb = _pick_block_batch(N, per_image_bytes)
    grid = (N // nb,)

    # VMEM budget: 3 tiled arrays x 2 pipeline buffers + weights + headroom,
    # clamped so it stays safe on v7x's 64 MiB physical VMEM.
    tile_bytes = nb * per_image_bytes
    weight_bytes = (w1.size + w2.size) * jnp.dtype(w1.dtype).itemsize
    vmem_need = 6 * tile_bytes + 4 * weight_bytes + (1 << 20)
    vmem_limit = int(min(max(vmem_need, 16 << 20), 32 << 20))

    cost = pl.CostEstimate(
        flops=2 * N * C * Cr * 2 + 2 * N * C * HW,
        transcendentals=N * C,
        bytes_accessed=3 * N * C * HW * itemsize + weight_bytes,
    )

    out = pl.pallas_call(
        _se_kernel,
        out_shape=jax.ShapeDtypeStruct((N, C, HW), x1.dtype),
        grid=grid,
        in_specs=[
            pl.BlockSpec((nb, C, HW), lambda n: (n, 0, 0)),
            pl.BlockSpec((nb, C, HW), lambda n: (n, 0, 0)),
            pl.BlockSpec(w1.shape, lambda n: (0, 0)),
            pl.BlockSpec(w2.shape, lambda n: (0, 0)),
        ],
        out_specs=pl.BlockSpec((nb, C, HW), lambda n: (n, 0, 0)),
        compiler_params=pltpu.CompilerParams(
            dimension_semantics=("parallel",),
            vmem_limit_bytes=vmem_limit),
        cost_estimate=cost,
    )(x1, x2, w1, w2)
    return out.reshape(N, C, H, W)


def _ref_forward(x1, x2, w1, w2):
    """Pure-JAX reference (matches the PyTorch module), for checking only."""
    y = jnp.mean(x1, axis=(2, 3))                              # (N, C)
    h = jnp.maximum(y @ w1.T, 0.0)                             # (N, C//r)
    g = jax.nn.sigmoid(h @ w2.T)                               # (N, C)
    return x2 + x1 * g[:, :, None, None]


if __name__ == "__main__":
    # Small shapes consistent with the module (reduction=16 needs C >= 16).
    N, C, H, W = 2, 32, 16, 16
    reduction = 16
    Cr = C // reduction                                        # = 2

    key = jax.random.PRNGKey(0)
    k1, k2, k3, k4 = jax.random.split(key, 4)

    x1 = jax.random.normal(k1, (N, C, H, W), jnp.float32)
    x2 = jax.random.normal(k2, (N, C, H, W), jnp.float32)

    # Kaiming-normal-ish init (mode='fan_out', relu), bias-free linears.
    w1 = jax.random.normal(k3, (Cr, C), jnp.float32) * jnp.sqrt(2.0 / Cr)
    w2 = jax.random.normal(k4, (C, Cr), jnp.float32) * jnp.sqrt(2.0 / C)

    out = se_forward(x1, x2, w1, w2)
    out = jax.block_until_ready(out)

    ref = _ref_forward(x1, x2, w1, w2)
    assert out.shape == x1.shape
    max_err = float(jnp.max(jnp.abs(out - ref)))
    assert jnp.allclose(out, ref, rtol=1e-2, atol=1e-2), f"max_err={max_err}"

    print("KERNEL_OK")
</pallas_src>

<mosaic_0001>
module attributes {stable_mosaic.version = 11 : i64} {
  func.func @_se_kernel(%arg0: i32, %arg1: memref<1x32x256xf32, #tpu.memory_space<vmem>>, %arg2: memref<1x32x256xf32, #tpu.memory_space<vmem>>, %arg3: memref<2x32xf32, #tpu.memory_space<vmem>>, %arg4: memref<32x2xf32, #tpu.memory_space<vmem>>, %arg5: memref<1x32x256xf32, #tpu.memory_space<vmem>>) attributes {dimension_semantics = [#tpu.dimension_semantics<parallel>], iteration_bounds = array<i64: 2>, scalar_prefetch = 0 : i64, scratch_operands = 0 : i64, tpu.core_type = #tpu.core_type<tc>, window_params = [{transform_indices = @transform_0, window_bounds = array<i64: 1, 32, 256>}, {transform_indices = @transform_1, window_bounds = array<i64: 1, 32, 256>}, {pipeline_mode = #tpu.pipeline_mode<synchronous>, transform_indices = @transform_2, window_bounds = array<i64: 2, 32>}, {pipeline_mode = #tpu.pipeline_mode<synchronous>, transform_indices = @transform_3, window_bounds = array<i64: 32, 2>}, {transform_indices = @transform_4, window_bounds = array<i64: 1, 32, 256>}]} {
    %c0 = arith.constant 0 : index
    %c0_0 = arith.constant 0 : index
    %c0_1 = arith.constant 0 : index
    %0 = vector.load %arg1[%c0, %c0_0, %c0_1] : memref<1x32x256xf32, #tpu.memory_space<vmem>>, vector<1x32x256xf32>
    %cst = arith.constant dense<0.000000e+00> : vector<1x32xf32>
    %1 = vector.multi_reduction <add>, %0, %cst [2] : vector<1x32x256xf32> to vector<1x32xf32>
    %cst_2 = arith.constant 3.906250e-03 : f32
    %2 = vector.broadcast %cst_2 : f32 to vector<1x32xf32>
    %3 = arith.mulf %1, %2 : vector<1x32xf32>
    %c0_3 = arith.constant 0 : index
    %c0_4 = arith.constant 0 : index
    %4 = vector.load %arg3[%c0_3, %c0_4] : memref<2x32xf32, #tpu.memory_space<vmem>>, vector<2x32xf32>
    %cst_5 = arith.constant dense<0.000000e+00> : vector<1x2xf32>
    %5 = tpu.matmul %3, %4, %cst_5 {dimension_numbers = #tpu.dot_dimension_numbers<[1], [1], [0], [0], [0, 0, 1, 0], [], []>} : vector<1x32xf32>, vector<2x32xf32>, vector<1x2xf32> -> vector<1x2xf32>
    %cst_6 = arith.constant 0.000000e+00 : f32
    %6 = vector.broadcast %cst_6 : f32 to vector<1x2xf32>
    %7 = arith.maximumf %5, %6 : vector<1x2xf32>
    %c0_7 = arith.constant 0 : index
    %c0_8 = arith.constant 0 : index
    %8 = vector.load %arg4[%c0_7, %c0_8] : memref<32x2xf32, #tpu.memory_space<vmem>>, vector<32x2xf32>
    %cst_9 = arith.constant dense<0.000000e+00> : vector<1x32xf32>
    %9 = tpu.matmul %7, %8, %cst_9 {dimension_numbers = #tpu.dot_dimension_numbers<[1], [1], [0], [0], [0, 0, 1, 0], [], []>} : vector<1x2xf32>, vector<32x2xf32>, vector<1x32xf32> -> vector<1x32xf32>
    %cst_10 = arith.constant 0.000000e+00 : f32
    %10 = vector.broadcast %cst_10 : f32 to vector<1x32xf32>
    %11 = arith.subf %10, %9 : vector<1x32xf32>
    %12 = math.exp %11 : vector<1x32xf32>
    %cst_11 = arith.constant 1.000000e+00 : f32
    %13 = vector.broadcast %cst_11 : f32 to vector<1x32xf32>
    %14 = arith.addf %13, %12 : vector<1x32xf32>
    %cst_12 = arith.constant 1.000000e+00 : f32
    %15 = vector.broadcast %cst_12 : f32 to vector<1x32xf32>
    %16 = arith.divf %15, %14 : vector<1x32xf32>
    %c0_13 = arith.constant 0 : index
    %c0_14 = arith.constant 0 : index
    %c0_15 = arith.constant 0 : index
    %17 = vector.load %arg2[%c0_13, %c0_14, %c0_15] : memref<1x32x256xf32, #tpu.memory_space<vmem>>, vector<1x32x256xf32>
    %c0_16 = arith.constant 0 : index
    %c0_17 = arith.constant 0 : index
    %c0_18 = arith.constant 0 : index
    %18 = vector.load %arg1[%c0_16, %c0_17, %c0_18] : memref<1x32x256xf32, #tpu.memory_space<vmem>>, vector<1x32x256xf32>
    %19 = vector.shape_cast %16 : vector<1x32xf32> to vector<1x32x1xf32>
    %20 = vector.broadcast %19 : vector<1x32x1xf32> to vector<1x32x256xf32>
    %21 = arith.mulf %18, %20 : vector<1x32x256xf32>
    %22 = arith.addf %17, %21 : vector<1x32x256xf32>
    %c0_19 = arith.constant 0 : index
    %c0_20 = arith.constant 0 : index
    %c0_21 = arith.constant 0 : index
    %23 = vector.load %arg5[%c0_19, %c0_20, %c0_21] : memref<1x32x256xf32, #tpu.memory_space<vmem>>, vector<1x32x256xf32>
    tpu.vector_store %arg5[%c0_19, %c0_20, %c0_21], %22 {strides = array<i32>} : memref<1x32x256xf32, #tpu.memory_space<vmem>>, vector<1x32x256xf32>,
    return
  }
  func.func @transform_0(%arg0: i32) -> (i32, i32, i32) {
    %c0_i32 = arith.constant 0 : i32
    %c0_i32_0 = arith.constant 0 : i32
    %c0_i32_1 = arith.constant 0 : i32
    return %arg0, %c0_i32, %c0_i32_0 : i32, i32, i32
  }
  func.func @transform_1(%arg0: i32) -> (i32, i32, i32) {
    %c0_i32 = arith.constant 0 : i32
    %c0_i32_0 = arith.constant 0 : i32
    %c0_i32_1 = arith.constant 0 : i32
    return %arg0, %c0_i32, %c0_i32_0 : i32, i32, i32
  }
  func.func @transform_2(%arg0: i32) -> (i32, i32) {
    %c0_i32 = arith.constant 0 : i32
    %c0_i32_0 = arith.constant 0 : i32
    %c0_i32_1 = arith.constant 0 : i32
    return %c0_i32, %c0_i32_0 : i32, i32
  }
  func.func @transform_3(%arg0: i32) -> (i32, i32) {
    %c0_i32 = arith.constant 0 : i32
    %c0_i32_0 = arith.constant 0 : i32
    %c0_i32_1 = arith.constant 0 : i32
    return %c0_i32, %c0_i32_0 : i32, i32
  }
  func.func @transform_4(%arg0: i32) -> (i32, i32, i32) {
    %c0_i32 = arith.constant 0 : i32
    %c0_i32_0 = arith.constant 0 : i32
    %c0_i32_1 = arith.constant 0 : i32
    return %arg0, %c0_i32, %c0_i32_0 : i32, i32, i32
  }
}

</mosaic_0001>

<llo_original>
// kernel: tpu_custom_call.1
$region0: #{tpu_custom_call.1}
  #allocation0 [shape = 'u32[]', space=smem, size = 0x4, offset = 0x4, fixed_abs, tag = 'smem constant byte address 0x4 - core index']
  #allocation1 [shape = 'u32[144,128]{1,0:T(1,128)}', space=vmem, size = 0x12000, scoped, tag = 'internal scratch']
  %s0 = inlined_call_operand.hbm [shape: f32[2,32,256], index: 0, kind: input, shape index: {}]
  %s1 = inlined_call_operand.hbm [shape: f32[2,32,256], index: 1, kind: input, shape index: {}]
  %s2 = inlined_call_operand.vmem [shape: f32[2,32], index: 2, kind: input, shape index: {}]
  %s3 = inlined_call_operand.vmem [shape: f32[32,2], index: 3, kind: input, shape index: {}]
  %s4 = inlined_call_operand.hbm [shape: f32[2,32,256], index: 4, kind: output, shape index: {}]
  %s5 = sld [smem:[#allocation0]]
  $region57: #{tpu_custom_call.1} parent=0
    _
  %s7 = ssub.s32 1, %s5
  %s8 = scalar_select 0, %s7, %s5
  $region1: #{tpu_custom_call.1} parent=0
    #allocation2 [shape = 'u8[65536]{0}', space=vmem, size = 0x10000, scoped, tag = 'input window, operand 0']
    #allocation3 [shape = 's32[2]{0}', space=sflag, size = 0x8, scoped, tag = 'scoped memory for tpu_custom_call.1']
    #allocation4 [shape = 's32[2]{0}', space=sflag, size = 0x8, scoped, tag = 'scoped memory for tpu_custom_call.1']
    #allocation5 [shape = 'u8[65536]{0}', space=vmem, size = 0x10000, scoped, tag = 'input window, operand 1']
    #allocation6 [shape = 's32[2]{0}', space=sflag, size = 0x8, scoped, tag = 'scoped memory for tpu_custom_call.1']
    #allocation7 [shape = 'u8[65536]{0}', space=vmem, size = 0x10000, scoped, tag = 'output window, operand 0']
    %9 = vsyncpa [#allocation3], 0
    %s10 = scalar_lea.sflag [#allocation3], 1
    %11 = vsyncpa %s10, 0
    %12 = vsyncpa [#allocation6], 0
    %s13 = scalar_lea.sflag [#allocation6], 1
    %14 = vsyncpa %s13, 0
    %15 = vsyncpa [#allocation4], 0
    %s16 = scalar_lea.sflag [#allocation4], 1
    %17 = vsyncpa %s16, 0
    loop: start=0, step=1, limit=4
    $region2: #{tpu_custom_call.1} parent=1 // loop_pre_header
      _
    $region3: #{tpu_custom_call.1} parent=1 // loop_header
      %s19 = sphi 0, %s23
      %p20 = scmp.ge.s32.totalorder %s19, 4
      %s29 = sphi 0, %s31
      %s32 = sphi 0, %s29
      %s33 = sphi 0, %s32
      %s49 = sphi 0, %s33
      %s55 = sphi 0, %s57
      %s58 = sphi 0, %s55
      %s59 = sphi 0, %s58
      %s75 = sphi 0, %s59
      %s79 = sphi 0, %s79
      %s81 = sphi 0, %s79
      %s82 = sphi 0, %s81
      %s96 = sphi 0, %s82
      %s100 = sphi 0, %s100
      %s102 = sphi 0, %s100
      %s103 = sphi 0, %s102
      %s117 = sphi 0, %s103
      %s123 = sphi 0, %s125
      %s126 = sphi 0, %s123
      %s127 = sphi 0, %s126
      %s143 = sphi 0, %s127
    $region4: #{tpu_custom_call.1} parent=1 // loop_header_branch
      %22 = sbr.rel (%p20) target = $region8
    $region5: #{tpu_custom_call.1} parent=1 // loop_body
      %s24 = ssub.s32 %s19, 1
      %s25 = ssub.s32 %s19, 2
      %s26 = sadd.s32 %s19, 1
      %s27 = ssub.s32 %s19, %s26
      %p28 = scmp.eq.s32.totalorder %s27, 0
      %s30 = sadd.s32 %s29, 1
      %s31 = scalar_select %p28, %s29, %s30
      %p34 = pneg %p28
      %p35 = scmp.eq.s32.totalorder %s19, 1
      %p36 = por %p34, %p35
      %p37 = scmp.ne.s32.totalorder %s29, %s32
      %p38 = scmp.eq.s32.totalorder %s19, 0
      %p39 = por %p37, %p38
      %p40 = scmp.ne.s32.totalorder %s29, %s32
      %p41 = scmp.eq.s32.totalorder %s24, 1
      %p42 = por %p40, %p41
      %p43 = scmp.ne.s32.totalorder %s32, %s33
      %p44 = scmp.eq.s32.totalorder %s24, 0
      %p45 = por %p43, %p44
      %p46 = scmp.ne.s32.totalorder %s32, %s33
      %p47 = scmp.eq.s32.totalorder %s25, 1
      %p48 = por %p46, %p47
      %p50 = scmp.ne.s32.totalorder %s33, %s49
      %p51 = scmp.eq.s32.totalorder %s25, 0
      %p52 = por %p50, %p51
      %s53 = ssub.s32 %s19, %s26
      %p54 = scmp.eq.s32.totalorder %s53, 0
      %s56 = sadd.s32 %s55, 1
      %s57 = scalar_select %p54, %s55, %s56
      %p60 = pneg %p54
      %p61 = scmp.eq.s32.totalorder %s19, 1
      %p62 = por %p60, %p61
      %p63 = scmp.ne.s32.totalorder %s55, %s58
      %p64 = scmp.eq.s32.totalorder %s19, 0
      %p65 = por %p63, %p64
      %p66 = scmp.ne.s32.totalorder %s55, %s58
      %p67 = scmp.eq.s32.totalorder %s24, 1
      %p68 = por %p66, %p67
      %p69 = scmp.ne.s32.totalorder %s58, %s59
      %p70 = scmp.eq.s32.totalorder %s24, 0
      %p71 = por %p69, %p70
      %p72 = scmp.ne.s32.totalorder %s58, %s59
      %p73 = scmp.eq.s32.totalorder %s25, 1
      %p74 = por %p72, %p73
      %p76 = scmp.ne.s32.totalorder %s59, %s75
      %p77 = scmp.eq.s32.totalorder %s25, 0
      %p78 = por %p76, %p77
      %s80 = sadd.s32 %s79, 1
      %p83 = scmp.eq.s32.totalorder %s19, 1
      %p84 = scmp.ne.s32.totalorder %s79, %s81
      %p85 = scmp.eq.s32.totalorder %s19, 0
      %p86 = por %p84, %p85
      %p87 = scmp.ne.s32.totalorder %s79, %s81
      %p88 = scmp.eq.s32.totalorder %s24, 1
      %p89 = por %p87, %p88
      %p90 = scmp.ne.s32.totalorder %s81, %s82
      %p91 = scmp.eq.s32.totalorder %s24, 0
      %p92 = por %p90, %p91
      %p93 = scmp.ne.s32.totalorder %s81, %s82
      %p94 = scmp.eq.s32.totalorder %s25, 1
      %p95 = por %p93, %p94
      %p97 = scmp.ne.s32.totalorder %s82, %s96
      %p98 = scmp.eq.s32.totalorder %s25, 0
      %p99 = por %p97, %p98
      %s101 = sadd.s32 %s100, 1
      %p104 = scmp.eq.s32.totalorder %s19, 1
      %p105 = scmp.ne.s32.totalorder %s100, %s102
      %p106 = scmp.eq.s32.totalorder %s19, 0
      %p107 = por %p105, %p106
      %p108 = scmp.ne.s32.totalorder %s100, %s102
      %p109 = scmp.eq.s32.totalorder %s24, 1
      %p110 = por %p108, %p109
      %p111 = scmp.ne.s32.totalorder %s102, %s103
      %p112 = scmp.eq.s32.totalorder %s24, 0
      %p113 = por %p111, %p112
      %p114 = scmp.ne.s32.totalorder %s102, %s103
      %p115 = scmp.eq.s32.totalorder %s25, 1
      %p116 = por %p114, %p115
      %p118 = scmp.ne.s32.totalorder %s103, %s117
      %p119 = scmp.eq.s32.totalorder %s25, 0
      %p120 = por %p118, %p119
      %s121 = ssub.s32 %s19, %s26
      %p122 = scmp.eq.s32.totalorder %s121, 0
      %s124 = sadd.s32 %s123, 1
      %s125 = scalar_select %p122, %s123, %s124
      %p128 = pneg %p122
      %p129 = scmp.eq.s32.totalorder %s19, 1
      %p130 = por %p128, %p129
      %p131 = scmp.ne.s32.totalorder %s123, %s126
      %p132 = scmp.eq.s32.totalorder %s19, 0
      %p133 = por %p131, %p132
      %p134 = scmp.ne.s32.totalorder %s123, %s126
      %p135 = scmp.eq.s32.totalorder %s24, 1
      %p136 = por %p134, %p135
      %p137 = scmp.ne.s32.totalorder %s126, %s127
      %p138 = scmp.eq.s32.totalorder %s24, 0
      %p139 = por %p137, %p138
      %p140 = scmp.ne.s32.totalorder %s126, %s127
      %p141 = scmp.eq.s32.totalorder %s25, 1
      %p142 = por %p140, %p141
      %p144 = scmp.ne.s32.totalorder %s127, %s143
      %p145 = scmp.eq.s32.totalorder %s25, 0
      %p146 = por %p144, %p145
      %p147 = scmp.le.s32.totalorder 1, %s19
      %p148 = scmp.lt.s32.totalorder %s19, 3
      %p149 = pnand %p147, %p148
      %p150 = pneg %p149
      // Predicated region
      $region9: #{tpu_custom_call.1} parent=5 // pred_check
        _
      $region10: #{tpu_custom_call.1} parent=5 // pred_check_branch
        %152 = sbr.rel (%p149) target = $region12
      $region11: #{tpu_custom_call.1} parent=5 // pred_region
        %s153 = ssub.s32 %s19, 1
        // Predicated region
        $region13: #{tpu_custom_call.1} parent=11 // pred_check
          %p154 = pneg %p92
        $region14: #{tpu_custom_call.1} parent=11 // pred_check_branch
          %156 = sbr.rel (%p154) target = $region16
        $region15: #{tpu_custom_call.1} parent=11 // pred_region
          _
        $region16: #{tpu_custom_call.1} parent=11 // pred_fallthru
          _
        // Predicated region
        $region17: #{tpu_custom_call.1} parent=11 // pred_check
          %p157 = pneg %p113
        $region18: #{tpu_custom_call.1} parent=11 // pred_check_branch
          %159 = sbr.rel (%p157) target = $region20
        $region19: #{tpu_custom_call.1} parent=11 // pred_region
          _
        $region20: #{tpu_custom_call.1} parent=11 // pred_fallthru
          _
      $region12: #{tpu_custom_call.1} parent=5 // pred_fallthru
        _
      %p160 = scmp.lt.s32.totalorder %s19, 2
      // Predicated region
      $region21: #{tpu_custom_call.1} parent=5 // pred_check
        %p161 = pneg %p160
      $region22: #{tpu_custom_call.1} parent=5 // pred_check_branch
        %163 = sbr.rel (%p161) target = $region24
      $region23: #{tpu_custom_call.1} parent=5 // pred_region
        // Predicated region
        $region25: #{tpu_custom_call.1} parent=23 // pred_check
          %p164 = pneg %p39
        $region26: #{tpu_custom_call.1} parent=23 // pred_check_branch
          %166 = sbr.rel (%p164) target = $region28
        $region27: #{tpu_custom_call.1} parent=23 // pred_region
          %s167 = sand.u32 %s29, 1
          %s168 = scalar_lea.sflag [#allocation3], %s167
          %s169 = sand.u32 %s29, 1
          %s170 = smul.addr %s169, 64
          %s171 = scalar_lea.vmem [#allocation2], %s170
          %s173 = ssub.s32 1024, 1024
          %174 = vsyncadd %s168, %s173
          %s175 = smul.addr %s19, 8
          %s176 = smul.addr %s175, 128
          %s177 = scalar_lea.hbm %s0, %s176
          %s178 = sshll.u32 %s171, 4
          %s179 = int_to_ptr.vmem [resolvable:$true] %s178
          %184 = dma.hbm_to_vmem [thread:$0]  %s177, 1024, %s179, %s168, 256, 256, 16
        $region28: #{tpu_custom_call.1} parent=23 // pred_fallthru
          _
        // Predicated region
        $region29: #{tpu_custom_call.1} parent=23 // pred_check
          %p185 = pneg %p65
        $region30: #{tpu_custom_call.1} parent=23 // pred_check_branch
          %187 = sbr.rel (%p185) target = $region32
        $region31: #{tpu_custom_call.1} parent=23 // pred_region
          %s188 = sand.u32 %s55, 1
          %s189 = scalar_lea.sflag [#allocation6], %s188
          %s190 = sand.u32 %s55, 1
          %s191 = smul.addr %s190, 64
          %s192 = scalar_lea.vmem [#allocation5], %s191
          %s194 = ssub.s32 1024, 1024
          %195 = vsyncadd %s189, %s194
          %s196 = smul.addr %s19, 8
          %s197 = smul.addr %s196, 128
          %s198 = scalar_lea.hbm %s1, %s197
          %s199 = sshll.u32 %s192, 4
          %s200 = int_to_ptr.vmem [resolvable:$true] %s199
          %205 = dma.hbm_to_vmem [thread:$0]  %s198, 1024, %s200, %s189, 256, 256, 16
        $region32: #{tpu_custom_call.1} parent=23 // pred_fallthru
          _
      $region24: #{tpu_custom_call.1} parent=5 // pred_fallthru
        _
      %p206 = scmp.le.s32.totalorder 1, %s19
      %p207 = scmp.lt.s32.totalorder %s19, 3
      %p208 = pnand %p206, %p207
      %p209 = pneg %p208
      // Predicated region
      $region33: #{tpu_custom_call.1} parent=5 // pred_check
        _
      $region34: #{tpu_custom_call.1} parent=5 // pred_check_branch
        %211 = sbr.rel (%p208) target = $region36
      $region35: #{tpu_custom_call.1} parent=5 // pred_region
        %s212 = ssub.s32 %s19, 1
        %s213 = sand.u32 %s32, 1
        %s214 = scalar_lea.sflag [#allocation3], %s213
        %s215 = sand.u32 %s32, 1
        %s216 = smul.addr %s215, 64
        %s217 = scalar_lea.vmem [#allocation2], %s216
        // Predicated region
        $region37: #{tpu_custom_call.1} parent=35 // pred_check
          %p218 = pneg %p45
        $region38: #{tpu_custom_call.1} parent=35 // pred_check_branch
          %220 = sbr.rel (%p218) target = $region40
        $region39: #{tpu_custom_call.1} parent=35 // pred_region
          %221 = dma.done %s214, 1024
        $region40: #{tpu_custom_call.1} parent=35 // pred_fallthru
          _
        %s222 = sand.u32 %s58, 1
        %s223 = scalar_lea.sflag [#allocation6], %s222
        %s224 = sand.u32 %s58, 1
        %s225 = smul.addr %s224, 64
        %s226 = scalar_lea.vmem [#allocation5], %s225
        // Predicated region
        $region41: #{tpu_custom_call.1} parent=35 // pred_check
          %p227 = pneg %p71
        $region42: #{tpu_custom_call.1} parent=35 // pred_check_branch
          %229 = sbr.rel (%p227) target = $region44
        $region43: #{tpu_custom_call.1} parent=35 // pred_region
          %230 = dma.done %s223, 1024
        $region44: #{tpu_custom_call.1} parent=35 // pred_fallthru
          _
        %s231 = sand.u32 %s32, 1
        %s232 = scalar_lea.sflag [#allocation3], %s231
        %s233 = sand.u32 %s32, 1
        %s234 = smul.addr %s233, 64
        %s235 = scalar_lea.vmem [#allocation2], %s234
        %p236 = pneg %p45
        %p237 = pneg %p42
        %s238 = sand.u32 %s58, 1
        %s239 = scalar_lea.sflag [#allocation6], %s238
        %s240 = sand.u32 %s58, 1
        %s241 = smul.addr %s240, 64
        %s242 = scalar_lea.vmem [#allocation5], %s241
        %p243 = pneg %p71
        %p244 = pneg %p68
        %p245 = pneg %p92
        %p246 = pneg %p89
        %p247 = pneg %p113
        %p248 = pneg %p110
        %p249 = pneg %p139
        %p250 = pneg %p136
        %s251 = sand.u32 %s126, 1
        %s252 = scalar_lea.sflag [#allocation4], %s251
        %s253 = sand.u32 %s126, 1
        %s254 = smul.addr %s253, 64
        %s255 = scalar_lea.vmem [#allocation7], %s254
        %v256 = vld [vmem:[%s217] sm:$0xff]
        %v257 = vld [vmem:[%s217 + $0x8] sm:$0xff]
        %v258 = vld [vmem:[%s217 + $0x10] sm:$0xff]
        %v259 = vld [vmem:[%s217 + $0x18] sm:$0xff]
        %v260 = vld [vmem:[%s217 + $0x20] sm:$0xff]
        %v261 = vld [vmem:[%s217 + $0x28] sm:$0xff]
        %v262 = vld [vmem:[%s217 + $0x30] sm:$0xff]
        %v263 = vld [vmem:[%s217 + $0x38] sm:$0xff]
        %v264 = vadd.f32 %v256, %v257
        %265 = vadd.xlane.f32.xlu0 %v264
        %v266 = vpop.xlane.xlu0 %265
        %v267 = vadd.f32 %v258, %v259
        %268 = vadd.xlane.f32.xlu0 %v267
        %v269 = vpop.xlane.xlu0 %268
        %v270 = vadd.f32 %v260, %v261
        %271 = vadd.xlane.f32.xlu0 %v270
        %v272 = vpop.xlane.xlu0 %271
        %v273 = vadd.f32 %v262, %v263
        %274 = vadd.xlane.f32.xlu0 %v273
        %v275 = vpop.xlane.xlu0 %274
        %v276 = vmul.f32 %v266, 0.00390625
        %v277 = vmul.f32 %v269, 0.00390625
        %v278 = vmul.f32 %v272, 0.00390625
        %v279 = vmul.f32 %v275, 0.00390625
        %v280 = vld [vmem:[%s2] sm:$0x3]
        %v285 = vlaneseq
        %v286 = vand.u32 %v285, 127
        %v287 = vlaneseq
        %v288 = vshrl.u32 %v287, 7
        %v289 = vsub.s32 %v286, %v288
        %v290 = vrot.slane %v276, %v289
        %v291 = vadd.s32 %v286, 4294967288
        %v292 = vlaneseq
        %v293 = vshrl.u32 %v292, 7
        %v294 = vsub.s32 %v291, %v293
        %v295 = vrot.slane %v277, %v294
        %vm296 = vcmask 130112
        %v297 = vsel %vm296, %v295, %v290
        %v298 = vadd.s32 %v286, 4294967280
        %v299 = vlaneseq
        %v300 = vshrl.u32 %v299, 7
        %v301 = vsub.s32 %v298, %v300
        %v302 = vrot.slane %v278, %v301
        %vm303 = vcmask 195712
        %v304 = vsel %vm303, %v302, %v297
        %v305 = vadd.s32 %v286, 4294967272
        %v306 = vlaneseq
        %v307 = vshrl.u32 %v306, 7
        %v308 = vsub.s32 %v305, %v307
        %v309 = vrot.slane %v279, %v308
        %vm310 = vcmask 261312
        %v311 = vsel %vm310, %v309, %v304
        %vm312 = vcmask 261120
        %v313 = vsel %vm312, %v311, 0
        %v316 = vsel %vm312, %v280, 0
        %318 = vmatprep.subr.mxu0 0.0
        %319 = vmatpush1.xpose.msra.mxu0 %v316
        %320 = vmatprep.subr.mxu0 0.0
        %321 = vmatpush1.xpose.msra.mxu0 0.0
        %322 = vmatprep.subr.mxu0 0.0
        %323 = vmatpush1.xpose.msra.mxu0 0.0
        %324 = vmatprep.subr.mxu0 0.0
        %325 = vmatpush1.xpose.msra.mxu0 0.0
        %326 = vmatprep.subr.mxu0 0.0
        %327 = vmatpush1.xpose.msra.mxu0 0.0
        %328 = vmatprep.subr.mxu0 0.0
        %329 = vmatpush1.xpose.msra.mxu0 0.0
        %330 = vmatprep.subr.mxu0 0.0
        %331 = vmatpush1.xpose.msra.mxu0 0.0
        %332 = vmatprep.subr.mxu0 0.0
        %333 = vmatpush1.xpose.msra.mxu0 0.0
        %334 = vmatprep.subr.mxu0 0.0
        %335 = vmatpush1.xpose.msra.mxu0 0.0
        %336 = vmatprep.subr.mxu0 0.0
        %337 = vmatpush1.xpose.msra.mxu0 0.0
        %338 = vmatprep.subr.mxu0 0.0
        %339 = vmatpush1.xpose.msra.mxu0 0.0
        %340 = vmatprep.subr.mxu0 0.0
        %341 = vmatpush1.xpose.msra.mxu0 0.0
        %342 = vmatprep.subr.mxu0 0.0
        %343 = vmatpush1.xpose.msra.mxu0 0.0
        %344 = vmatprep.subr.mxu0 0.0
        %345 = vmatpush1.xpose.msra.mxu0 0.0
        %346 = vmatprep.subr.mxu0 0.0
        %347 = vmatpush1.xpose.msra.mxu0 0.0
        %348 = vmatprep.subr.mxu0 0.0
        %349 = vmatpush1.xpose.msra.mxu0 0.0
        %350 = vmatprep.subr.mxu0 0.0
        %351 = vmatpush1.xpose.msra.mxu0 0.0
        %352 = vmatprep.subr.mxu0 0.0
        %353 = vmatpush1.xpose.msra.mxu0 0.0
        %354 = vmatprep.subr.mxu0 0.0
        %355 = vmatpush1.xpose.msra.mxu0 0.0
        %356 = vmatprep.subr.mxu0 0.0
        %357 = vmatpush1.xpose.msra.mxu0 0.0
        %358 = vmatprep.subr.mxu0 0.0
        %359 = vmatpush1.xpose.msra.mxu0 0.0
        %360 = vmatprep.subr.mxu0 0.0
        %361 = vmatpush1.xpose.msra.mxu0 0.0
        %362 = vmatprep.subr.mxu0 0.0
        %363 = vmatpush1.xpose.msra.mxu0 0.0
        %364 = vmatprep.subr.mxu0 0.0
        %365 = vmatpush1.xpose.msra.mxu0 0.0
        %366 = vmatprep.subr.mxu0 0.0
        %367 = vmatpush1.xpose.msra.mxu0 0.0
        %368 = vmatprep.subr.mxu0 0.0
        %369 = vmatpush1.xpose.msra.mxu0 0.0
        %370 = vmatprep.subr.mxu0 0.0
        %371 = vmatpush1.xpose.msra.mxu0 0.0
        %372 = vmatprep.subr.mxu0 0.0
        %373 = vmatpush1.xpose.msra.mxu0 0.0
        %374 = vmatprep.subr.mxu0 0.0
        %375 = vmatpush1.xpose.msra.mxu0 0.0
        %376 = vmatprep.subr.mxu0 0.0
        %377 = vmatpush1.xpose.msra.mxu0 0.0
        %378 = vmatprep.subr.mxu0 0.0
        %379 = vmatpush1.xpose.msra.mxu0 0.0
        %380 = vmatprep.subr.mxu0 0.0
        %381 = vmatpush1.xpose.msra.mxu0 0.0
        %382 = vmatprep.mubr.f32.mxu0 0.0
        %383 = vmatmul.mubr.f32.gmra.mrb[0].mxu0 %v313
        %v384 = vpop.f32.mrb[0].mxu0
        %v385 = vadd.f32 0.0, %v384
        %v386 = vpop.f32.mrb[0].mxu0
        %387 = vdwg.mxu0
        %v388 = vmax.f32 %v385, 0.0
        %v389 = vld [vmem:[%s3] sm:$0xff]
        %v390 = vld [vmem:[%s3 + $0x8] sm:$0xff]
        %v391 = vld [vmem:[%s3 + $0x10] sm:$0xff]
        %v392 = vld [vmem:[%s3 + $0x18] sm:$0xff]
        %vm393 = vcmask 15360
        %v395 = vsel %vm393, %v388, 0
        %v398 = vsel %vm393, %v389, 0
        %v401 = vsel %vm393, %v390, 0
        %v404 = vsel %vm393, %v391, 0
        %v407 = vsel %vm393, %v392, 0
        %409 = vmatprep.subr.mxu0 0.0
        %410 = vmatpush1.xpose.msra.mxu0 %v398
        %411 = vmatprep.subr.mxu0 0.0
        %412 = vmatpush1.xpose.msra.mxu0 %v401
        %413 = vmatprep.subr.mxu0 0.0
        %414 = vmatpush1.xpose.msra.mxu0 %v404
        %415 = vmatprep.subr.mxu0 0.0
        %416 = vmatpush1.xpose.msra.mxu0 %v407
        %417 = vmatprep.subr.mxu0 0.0
        %418 = vmatpush1.xpose.msra.mxu0 0.0
        %419 = vmatprep.subr.mxu0 0.0
        %420 = vmatpush1.xpose.msra.mxu0 0.0
        %421 = vmatprep.subr.mxu0 0.0
        %422 = vmatpush1.xpose.msra.mxu0 0.0
        %423 = vmatprep.subr.mxu0 0.0
        %424 = vmatpush1.xpose.msra.mxu0 0.0
        %425 = vmatprep.subr.mxu0 0.0
        %426 = vmatpush1.xpose.msra.mxu0 0.0
        %427 = vmatprep.subr.mxu0 0.0
        %428 = vmatpush1.xpose.msra.mxu0 0.0
        %429 = vmatprep.subr.mxu0 0.0
        %430 = vmatpush1.xpose.msra.mxu0 0.0
        %431 = vmatprep.subr.mxu0 0.0
        %432 = vmatpush1.xpose.msra.mxu0 0.0
        %433 = vmatprep.subr.mxu0 0.0
        %434 = vmatpush1.xpose.msra.mxu0 0.0
        %435 = vmatprep.subr.mxu0 0.0
        %436 = vmatpush1.xpose.msra.mxu0 0.0
        %437 = vmatprep.subr.mxu0 0.0
        %438 = vmatpush1.xpose.msra.mxu0 0.0
        %439 = vmatprep.subr.mxu0 0.0
        %440 = vmatpush1.xpose.msra.mxu0 0.0
        %441 = vmatprep.subr.mxu0 0.0
        %442 = vmatpush1.xpose.msra.mxu0 0.0
        %443 = vmatprep.subr.mxu0 0.0
        %444 = vmatpush1.xpose.msra.mxu0 0.0
        %445 = vmatprep.subr.mxu0 0.0
        %446 = vmatpush1.xpose.msra.mxu0 0.0
        %447 = vmatprep.subr.mxu0 0.0
        %448 = vmatpush1.xpose.msra.mxu0 0.0
        %449 = vmatprep.subr.mxu0 0.0
        %450 = vmatpush1.xpose.msra.mxu0 0.0
        %451 = vmatprep.subr.mxu0 0.0
        %452 = vmatpush1.xpose.msra.mxu0 0.0
        %453 = vmatprep.subr.mxu0 0.0
        %454 = vmatpush1.xpose.msra.mxu0 0.0
        %455 = vmatprep.subr.mxu0 0.0
        %456 = vmatpush1.xpose.msra.mxu0 0.0
        %457 = vmatprep.subr.mxu0 0.0
        %458 = vmatpush1.xpose.msra.mxu0 0.0
        %459 = vmatprep.subr.mxu0 0.0
        %460 = vmatpush1.xpose.msra.mxu0 0.0
        %461 = vmatprep.subr.mxu0 0.0
        %462 = vmatpush1.xpose.msra.mxu0 0.0
        %463 = vmatprep.subr.mxu0 0.0
        %464 = vmatpush1.xpose.msra.mxu0 0.0
        %465 = vmatprep.subr.mxu0 0.0
        %466 = vmatpush1.xpose.msra.mxu0 0.0
        %467 = vmatprep.subr.mxu0 0.0
        %468 = vmatpush1.xpose.msra.mxu0 0.0
        %469 = vmatprep.subr.mxu0 0.0
        %470 = vmatpush1.xpose.msra.mxu0 0.0
        %471 = vmatprep.subr.mxu0 0.0
        %472 = vmatpush1.xpose.msra.mxu0 0.0
        %473 = vmatprep.mubr.f32.mxu0 0.0
        %474 = vmatmul.mubr.f32.gmra.mrb[0].mxu0 %v395
        %v475 = vpop.f32.mrb[0].mxu0
        %v476 = vadd.f32 0.0, %v475
        %v477 = vpop.f32.mrb[0].mxu0
        %478 = vdwg.mxu0
        %v479 = vsub.f32 0.0, %v476
        %v480 = vmul.f32 %v479, 1.442695
        %v481 = vpow.pop %v480
        %v482 = vadd.f32 %v481, 1.0
        %v483 = vrcp.pop %v482
        %v484 = vmul.f32 1.0, %v483
        %v485 = vld [vmem:[%s226] sm:$0xff]
        %v486 = vld [vmem:[%s226 + $0x8] sm:$0xff]
        %v487 = vld [vmem:[%s226 + $0x10] sm:$0xff]
        %v488 = vld [vmem:[%s226 + $0x18] sm:$0xff]
        %v489 = vld [vmem:[%s226 + $0x20] sm:$0xff]
        %v490 = vld [vmem:[%s226 + $0x28] sm:$0xff]
        %v491 = vld [vmem:[%s226 + $0x30] sm:$0xff]
        %v492 = vld [vmem:[%s226 + $0x38] sm:$0xff]
        %v493 = vlaneseq
        %v494 = vshrl.u32 %v493, 7
        %v495 = vsub.s32 0, %v494
        %v496 = vrot.slane %v484, %v495
        %498 = vbcast.lane.b32.xlu0 %v496, 256
        %v499 = vpop.permute.xlu0 %498
        %s501 = sor.u32 256, 8
        %502 = vbcast.lane.b32.xlu0 %v496, %s501
        %v503 = vpop.permute.xlu0 %502
        %s505 = sor.u32 256, 16
        %506 = vbcast.lane.b32.xlu0 %v496, %s505
        %v507 = vpop.permute.xlu0 %506
        %s509 = sor.u32 256, 24
        %510 = vbcast.lane.b32.xlu0 %v496, %s509
        %v511 = vpop.permute.xlu0 %510
        %v512 = vmul.f32 %v256, %v499
        %v513 = vmul.f32 %v257, %v499
        %v514 = vmul.f32 %v258, %v503
        %v515 = vmul.f32 %v259, %v503
        %v516 = vmul.f32 %v260, %v507
        %v517 = vmul.f32 %v261, %v507
        %v518 = vmul.f32 %v262, %v511
        %v519 = vmul.f32 %v263, %v511
        %v520 = vadd.f32 %v485, %v512
        %v521 = vadd.f32 %v486, %v513
        %v522 = vadd.f32 %v487, %v514
        %v523 = vadd.f32 %v488, %v515
        %v524 = vadd.f32 %v489, %v516
        %v525 = vadd.f32 %v490, %v517
        %v526 = vadd.f32 %v491, %v518
        %v527 = vadd.f32 %v492, %v519
        %528 = vst [vmem:[%s255] sm:$0xff] %v520
        %529 = vst [vmem:[%s255 + $0x8] sm:$0xff] %v521
        %530 = vst [vmem:[%s255 + $0x10] sm:$0xff] %v522
        %531 = vst [vmem:[%s255 + $0x18] sm:$0xff] %v523
        %532 = vst [vmem:[%s255 + $0x20] sm:$0xff] %v524
        %533 = vst [vmem:[%s255 + $0x28] sm:$0xff] %v525
        %534 = vst [vmem:[%s255 + $0x30] sm:$0xff] %v526
        %535 = vst [vmem:[%s255 + $0x38] sm:$0xff] %v527
        %s536 = sand.u32 %s126, 1
        %s537 = scalar_lea.sflag [#allocation4], %s536
        %s538 = sand.u32 %s126, 1
        %s539 = smul.addr %s538, 64
        %s540 = scalar_lea.vmem [#allocation7], %s539
        // Predicated region
        $region45: #{tpu_custom_call.1} parent=35 // pred_check
          %p541 = pneg %p136
        $region46: #{tpu_custom_call.1} parent=35 // pred_check_branch
          %543 = sbr.rel (%p541) target = $region48
        $region47: #{tpu_custom_call.1} parent=35 // pred_region
          %s545 = ssub.s32 1024, 1024
          %546 = vsyncadd %s537, %s545
          %s547 = smul.addr %s24, 8
          %s548 = smul.addr %s547, 128
          %s549 = scalar_lea.hbm %s4, %s548
          %s550 = sshll.u32 %s540, 4
          %s551 = int_to_ptr.vmem [resolvable:$true] %s550
          %556 = dma.vmem_to_hbm [thread:$0]  %s551, 1024, %s549, %s537, 256, 256, 16
        $region48: #{tpu_custom_call.1} parent=35 // pred_fallthru
          _
      $region36: #{tpu_custom_call.1} parent=5 // pred_fallthru
        _
      %p557 = scmp.le.s32.totalorder 2, %s19
      // Predicated region
      $region49: #{tpu_custom_call.1} parent=5 // pred_check
        %p558 = pneg %p557
      $region50: #{tpu_custom_call.1} parent=5 // pred_check_branch
        %560 = sbr.rel (%p558) target = $region52
      $region51: #{tpu_custom_call.1} parent=5 // pred_region
        %s561 = ssub.s32 %s19, 2
        // Predicated region
        $region53: #{tpu_custom_call.1} parent=51 // pred_check
          %p562 = pneg %p142
        $region54: #{tpu_custom_call.1} parent=51 // pred_check_branch
          %564 = sbr.rel (%p562) target = $region56
        $region55: #{tpu_custom_call.1} parent=51 // pred_region
          %s565 = sand.u32 %s127, 1
          %s566 = scalar_lea.sflag [#allocation4], %s565
          %s567 = sand.u32 %s127, 1
          %s568 = smul.addr %s567, 64
          %s569 = scalar_lea.vmem [#allocation7], %s568
          %570 = dma.done %s566, 1024
        $region56: #{tpu_custom_call.1} parent=51 // pred_fallthru
          _
      $region52: #{tpu_custom_call.1} parent=5 // pred_fallthru
        _
    $region6: #{tpu_custom_call.1} parent=1 // loop_footer
      %s23 = sadd.s32 1, %s19
    $region7: #{tpu_custom_call.1} parent=1 // loop_footer_branch
      %18 = sbr.rel target = $region3
    $region8: #{tpu_custom_call.1} parent=1 // loop_exit
      _
    %571 = vsyncpa [#allocation3], 1
    %s572 = scalar_lea.sflag [#allocation3], 1
    %573 = vsyncpa %s572, 1
    %574 = vsyncpa [#allocation6], 1
    %s575 = scalar_lea.sflag [#allocation6], 1
    %576 = vsyncpa %s575, 1
    %577 = vsyncpa [#allocation4], 1
    %s578 = scalar_lea.sflag [#allocation4], 1
    %579 = vsyncpa %s578, 1

</llo_original>
